<compile_context>
chip_gen: v7x
topology: tpu7x:2x2x1
jax: 0.10.0
libtpu: 0.0.40
codegen_flags: <defaults>
</compile_context>

<pallas_src>
import functools

import jax
import jax.numpy as jnp
from jax import lax
from jax.experimental import pallas as pl
from jax.experimental.pallas import tpu as pltpu


def _round_up(x, m):
    return ((x + m - 1) // m) * m


def _vmem_capacity_bytes():
    """Physical VMEM of the current TPU generation (conservative fallback: v7x 64 MiB/TC)."""
    try:
        info = pltpu.get_tpu_info()
        cap = getattr(info, "vmem_capacity_bytes", None)
        if cap:
            return int(cap)
    except Exception:
        pass
    return 64 * 1024 * 1024


def focal_loss_kernel(bbox_in_ref, bbox_tg_ref, label_in_ref, label_tg_ref,
                      out_ref, *, gamma, a_total, tile_a):
    i = pl.program_id(0)

    # ---- anchor-validity mask for the ragged tail tile -----------------------------------
    tgt = label_tg_ref[...]                                    # (N, Ta) int32
    n, ta = tgt.shape
    lane = i * tile_a + lax.broadcasted_iota(jnp.int32, (n, ta), 1)
    valid = lane < a_total                                     # (N, Ta) bool
    positive = jnp.logical_and(valid, tgt > 0)                 # (N, Ta) bool
    num_pos_t = jnp.sum(positive.astype(jnp.float32))

    # ---- Smooth-L1 (beta=1) over positive anchors, lane-dense (N, 4, Ta) ------------------
    # Select-mask (not multiply): out-of-bounds tail reads are undefined and may hold NaN/Inf.
    bbox_in = bbox_in_ref[...].astype(jnp.float32)
    bbox_tg = bbox_tg_ref[...].astype(jnp.float32)
    d = jnp.abs(bbox_in - bbox_tg)
    sl1 = jnp.where(d < 1.0, 0.5 * d * d, d - 0.5)
    bbox_t = jnp.sum(jnp.where(positive[:, None, :], sl1, 0.0))

    # ---- focal-weighted NLL: select-gather the target-class log-prob, then weight ---------
    logp = label_in_ref[...].astype(jnp.float32)               # (N, C, Ta)
    c = logp.shape[1]
    cls_iota = lax.broadcasted_iota(jnp.int32, (n, c, ta), 1)
    gathered = jnp.sum(jnp.where(cls_iota == tgt[:, None, :], logp, 0.0), axis=1)  # (N, Ta)
    gathered = jnp.where(valid, gathered, 0.0)                 # zero the tail before exp/pow
    w = 1.0 - jnp.exp(gathered)                                # only N*Ta exps (not N*C*Ta)
    if isinstance(gamma, int) or float(gamma).is_integer():
        focal = w ** int(gamma)                                # integer_pow -> VPU multiplies
    else:
        focal = jnp.maximum(w, 0.0) ** gamma                   # guard NaN for float gamma
    label_t = -jnp.sum(focal * gathered)

    # ---- write this tile's partial sums into a lane-dense (1, 1, 128) row -----------------
    # lane 0: num_pos, lane 1: bbox_loss, lane 2: label_loss, rest zero.
    lane_idx = lax.broadcasted_iota(jnp.int32, (1, 1, 128), 2)
    row = jnp.where(lane_idx == 0, num_pos_t,
                    jnp.where(lane_idx == 1, bbox_t,
                              jnp.where(lane_idx == 2, label_t, 0.0)))
    out_ref[...] = row


def focal_loss(bbox_input, label_input, bbox_target, label_target,
               alpha=1.0, gamma=2, tile_a=None, compute_dtype=jnp.bfloat16):
    """bbox_input/bbox_target: (N, A, 4); label_input: (N, C, A) log-probs;
    label_target: (N, A) int class ids (0 = background)."""
    N, A, _ = bbox_input.shape
    C = label_input.shape[1]

    # Lane-dense layouts: anchor axis last everywhere. Inputs cast to bf16 by default
    # (kernel upcasts and accumulates in f32).
    # TODO(synk): if the producer can emit bbox tensors as (N, 4, A), drop these transposes.
    bbox_in = jnp.transpose(bbox_input, (0, 2, 1)).astype(compute_dtype)   # (N, 4, A)
    bbox_tg = jnp.transpose(bbox_target, (0, 2, 1)).astype(compute_dtype)  # (N, 4, A)
    label_in = label_input.astype(compute_dtype)                           # (N, C, A)
    label_tg = label_target.astype(jnp.int32)                              # (N, A)

    # Per-generation VMEM budget: ~3/4 of physical (v7x: 48 MiB, v5e/v6e: 96 MiB).
    vmem_cap = _vmem_capacity_bytes()
    vmem_limit = min((vmem_cap * 3) // 4, 100 * 1024 * 1024)

    # Size tile_a by bytes-per-step: target a few MiB of double-buffered blocks so the
    # ~0.35us per-grid-step overhead is amortized, while staying well under the VMEM limit.
    itemsize = jnp.dtype(compute_dtype).itemsize
    bytes_per_lane = 2 * (N * C * itemsize          # label_in (dominant), double-buffered
                          + 2 * N * 4 * itemsize    # bbox input + target
                          + N * 4)                  # int32 label_target
    if tile_a is None:
        target = min(8 * 1024 * 1024, vmem_limit // 4)
        tile_a = target // max(bytes_per_lane, 1)
    tile_a = max(128, min(_round_up(int(tile_a), 128), _round_up(A, 128), 16384))
    num_tiles = -(-A // tile_a)   # ragged tail handled in-kernel, no jnp.pad

    kernel = functools.partial(focal_loss_kernel, gamma=gamma, a_total=A, tile_a=tile_a)

    partials = pl.pallas_call(
        kernel,
        out_shape=jax.ShapeDtypeStruct((num_tiles, 1, 128), jnp.float32),
        grid=(num_tiles,),
        in_specs=[
            pl.BlockSpec((N, 4, tile_a), lambda i: (0, 0, i)),
            pl.BlockSpec((N, 4, tile_a), lambda i: (0, 0, i)),
            pl.BlockSpec((N, C, tile_a), lambda i: (0, 0, i)),
            pl.BlockSpec((N, tile_a), lambda i: (0, i)),
        ],
        out_specs=pl.BlockSpec((1, 1, 128), lambda i: (i, 0, 0)),
        compiler_params=pltpu.CompilerParams(
            # No carried state -> tiles are independent; shards across both TCs on v7x.
            dimension_semantics=("parallel",),
            vmem_limit_bytes=vmem_limit,
        ),
    )(bbox_in, bbox_tg, label_in, label_tg)

    # Tiny final reduction + divide in plain JAX.
    sums = jnp.sum(partials, axis=(0, 1))                       # (128,)
    num_pos, bbox_loss, label_loss = sums[0], sums[1], sums[2]
    alpha = float(alpha)
    return (bbox_loss + alpha * label_loss) / (num_pos + 1.0) / (1.0 + alpha)


def focal_loss_ref(bbox_input, label_input, bbox_target, label_target,
                   alpha=1.0, gamma=2):
    """Pure-JAX reference mirroring the PyTorch forward."""
    positive = label_target > 0
    num_pos = jnp.sum(positive.astype(jnp.float32))
    d = jnp.abs(bbox_input - bbox_target)
    sl1 = jnp.where(d < 1.0, 0.5 * d * d, d - 0.5)
    bbox_loss = jnp.sum(sl1 * positive[:, :, None].astype(jnp.float32))
    weighted = ((1.0 - jnp.exp(label_input)) ** gamma) * label_input
    gathered = jnp.take_along_axis(weighted, label_target[:, None, :], axis=1)
    label_loss = -jnp.sum(gathered)
    return (bbox_loss + alpha * label_loss) / (num_pos + 1.0) / (1.0 + alpha)


if __name__ == "__main__":
    key = jax.random.PRNGKey(0)
    k1, k2, k3, k4 = jax.random.split(key, 4)

    # Small shapes: batch=2, anchors=16, classes=4 (class 0 = background)
    N, A, C = 2, 16, 4
    bbox_input = jax.random.normal(k1, (N, A, 4), dtype=jnp.float32)
    bbox_target = jax.random.normal(k2, (N, A, 4), dtype=jnp.float32)
    logits = jax.random.normal(k3, (N, C, A), dtype=jnp.float32)
    label_input = jax.nn.log_softmax(logits, axis=1)           # log-probs, NLLLoss style
    label_target = jax.random.randint(k4, (N, A), 0, C, dtype=jnp.int32)

    rb = lambda x: x.astype(jnp.bfloat16).astype(jnp.float32)  # bf16-round helper for refs

    # f32-fed path: tight check against the reference.
    out = jax.block_until_ready(
        focal_loss(bbox_input, label_input, bbox_target, label_target,
                   alpha=1.0, gamma=2, compute_dtype=jnp.float32))
    ref = focal_loss_ref(bbox_input, label_input, bbox_target, label_target, 1.0, 2)
    assert jnp.allclose(out, ref, rtol=1e-5, atol=1e-5), (out, ref)

    # Default bf16-fed path: compare against the reference on bf16-rounded inputs.
    out_bf = jax.block_until_ready(
        focal_loss(bbox_input, label_input, bbox_target, label_target, alpha=1.0, gamma=2))
    ref_bf = focal_loss_ref(rb(bbox_input), rb(label_input), rb(bbox_target), label_target, 1.0, 2)
    assert jnp.allclose(out_bf, ref_bf, rtol=1e-4, atol=1e-4), (out_bf, ref_bf)

    # Multi-tile + ragged-tail path: anchors not a multiple of the tile (no wrapper pad).
    k5, k6, k7, k8 = jax.random.split(jax.random.PRNGKey(1), 4)
    A2 = 300
    bbox_input2 = jax.random.normal(k5, (N, A2, 4), dtype=jnp.float32)
    bbox_target2 = jax.random.normal(k6, (N, A2, 4), dtype=jnp.float32)
    label_input2 = jax.nn.log_softmax(
        jax.random.normal(k7, (N, C, A2), dtype=jnp.float32), axis=1)
    label_target2 = jax.random.randint(k8, (N, A2), 0, C, dtype=jnp.int32)

    out2 = jax.block_until_ready(
        focal_loss(bbox_input2, label_input2, bbox_target2, label_target2,
                   alpha=1.0, gamma=2, tile_a=128, compute_dtype=jnp.float32))
    ref2 = focal_loss_ref(bbox_input2, label_input2, bbox_target2, label_target2, 1.0, 2)
    assert jnp.allclose(out2, ref2, rtol=1e-5, atol=1e-5), (out2, ref2)

    out2_bf = jax.block_until_ready(
        focal_loss(bbox_input2, label_input2, bbox_target2, label_target2,
                   alpha=1.0, gamma=2, tile_a=128))
    ref2_bf = focal_loss_ref(rb(bbox_input2), rb(label_input2), rb(bbox_target2),
                             label_target2, 1.0, 2)
    assert jnp.allclose(out2_bf, ref2_bf, rtol=1e-4, atol=1e-4), (out2_bf, ref2_bf)

    print("KERNEL_OK")
</pallas_src>

<mosaic_0001>
module attributes {stable_mosaic.version = 11 : i64} {
  func.func @focal_loss_kernel(%arg0: i32, %arg1: memref<2x4x128xf32, #tpu.memory_space<vmem>>, %arg2: memref<2x4x128xf32, #tpu.memory_space<vmem>>, %arg3: memref<2x4x128xf32, #tpu.memory_space<vmem>>, %arg4: memref<2x128xi32, #tpu.memory_space<vmem>>, %arg5: memref<1x1x128xf32, #tpu.memory_space<vmem>>) attributes {dimension_semantics = [#tpu.dimension_semantics<parallel>], iteration_bounds = array<i64: 1>, scalar_prefetch = 0 : i64, scratch_operands = 0 : i64, tpu.core_type = #tpu.core_type<tc>, window_params = [{transform_indices = @transform_0, window_bounds = array<i64: 2, 4, 128>}, {transform_indices = @transform_1, window_bounds = array<i64: 2, 4, 128>}, {transform_indices = @transform_2, window_bounds = array<i64: 2, 4, 128>}, {transform_indices = @transform_3, window_bounds = array<i64: 2, 128>}, {transform_indices = @transform_4, window_bounds = array<i64: 1, 1, 128>}]} {
    %c0 = arith.constant 0 : index
    %c0_0 = arith.constant 0 : index
    %0 = vector.load %arg4[%c0, %c0_0] : memref<2x128xi32, #tpu.memory_space<vmem>>, vector<2x128xi32>
    %c128_i32 = arith.constant 128 : i32
    %1 = arith.muli %arg0, %c128_i32 : i32
    %2 = tpu.iota {dimensions = array<i32: 1>} : vector<2x128xi32>
    %3 = vector.broadcast %1 : i32 to vector<2x128xi32>
    %4 = arith.addi %3, %2 : vector<2x128xi32>
    %c16_i32 = arith.constant 16 : i32
    %5 = vector.broadcast %c16_i32 : i32 to vector<2x128xi32>
    %6 = arith.cmpi slt, %4, %5 : vector<2x128xi32>
    %c0_i32 = arith.constant 0 : i32
    %7 = vector.broadcast %c0_i32 : i32 to vector<2x128xi32>
    %8 = arith.cmpi sgt, %0, %7 : vector<2x128xi32>
    %9 = arith.andi %6, %8 : vector<2x128xi1>
    %10 = arith.extui %9 : vector<2x128xi1> to vector<2x128xi32>
    %11 = arith.sitofp %10 : vector<2x128xi32> to vector<2x128xf32>
    %12 = vector.shape_cast %11 : vector<2x128xf32> to vector<1x2x128xf32>
    %cst = arith.constant dense<0.000000e+00> : vector<1xf32>
    %13 = vector.multi_reduction <add>, %12, %cst [1, 2] : vector<1x2x128xf32> to vector<1xf32>
    %14 = vector.shape_cast %13 : vector<1xf32> to vector<1x1x1xf32>
    %15 = vector.extract %14[0, 0, 0] : f32 from vector<1x1x1xf32>
    %c0_1 = arith.constant 0 : index
    %c0_2 = arith.constant 0 : index
    %c0_3 = arith.constant 0 : index
    %16 = vector.load %arg1[%c0_1, %c0_2, %c0_3] : memref<2x4x128xf32, #tpu.memory_space<vmem>>, vector<2x4x128xf32>
    %c0_4 = arith.constant 0 : index
    %c0_5 = arith.constant 0 : index
    %c0_6 = arith.constant 0 : index
    %17 = vector.load %arg2[%c0_4, %c0_5, %c0_6] : memref<2x4x128xf32, #tpu.memory_space<vmem>>, vector<2x4x128xf32>
    %18 = arith.subf %16, %17 : vector<2x4x128xf32>
    %19 = math.absf %18 : vector<2x4x128xf32>
    %cst_7 = arith.constant 1.000000e+00 : f32
    %20 = vector.broadcast %cst_7 : f32 to vector<2x4x128xf32>
    %21 = arith.cmpf olt, %19, %20 : vector<2x4x128xf32>
    %cst_8 = arith.constant 5.000000e-01 : f32
    %22 = vector.broadcast %cst_8 : f32 to vector<2x4x128xf32>
    %23 = arith.mulf %22, %19 : vector<2x4x128xf32>
    %24 = arith.mulf %23, %19 : vector<2x4x128xf32>
    %cst_9 = arith.constant 5.000000e-01 : f32
    %25 = vector.broadcast %cst_9 : f32 to vector<2x4x128xf32>
    %26 = arith.subf %19, %25 : vector<2x4x128xf32>
    %27 = arith.select %21, %24, %26 : vector<2x4x128xi1>, vector<2x4x128xf32>
    %28 = vector.shape_cast %9 : vector<2x128xi1> to vector<2x1x128xi1>
    %cst_10 = arith.constant 0.000000e+00 : f32
    %29 = vector.shape_cast %28 : vector<2x1x128xi1> to vector<2x1x128xi1>
    %30 = vector.broadcast %29 : vector<2x1x128xi1> to vector<2x4x128xi1>
    %31 = vector.broadcast %cst_10 : f32 to vector<2x4x128xf32>
    %32 = arith.select %30, %27, %31 : vector<2x4x128xi1>, vector<2x4x128xf32>
    %33 = vector.shape_cast %32 : vector<2x4x128xf32> to vector<1x2x4x128xf32>
    %cst_11 = arith.constant dense<0.000000e+00> : vector<1xf32>
    %34 = vector.multi_reduction <add>, %33, %cst_11 [1, 2, 3] : vector<1x2x4x128xf32> to vector<1xf32>
    %35 = vector.shape_cast %34 : vector<1xf32> to vector<1x1x1x1xf32>
    %36 = vector.extract %35[0, 0, 0, 0] : f32 from vector<1x1x1x1xf32>
    %c0_12 = arith.constant 0 : index
    %c0_13 = arith.constant 0 : index
    %c0_14 = arith.constant 0 : index
    %37 = vector.load %arg3[%c0_12, %c0_13, %c0_14] : memref<2x4x128xf32, #tpu.memory_space<vmem>>, vector<2x4x128xf32>
    %38 = tpu.iota {dimensions = array<i32: 1>} : vector<2x4x128xi32>
    %39 = vector.shape_cast %0 : vector<2x128xi32> to vector<2x1x128xi32>
    %40 = vector.broadcast %39 : vector<2x1x128xi32> to vector<2x4x128xi32>
    %41 = arith.cmpi eq, %38, %40 : vector<2x4x128xi32>
    %cst_15 = arith.constant 0.000000e+00 : f32
    %42 = vector.broadcast %cst_15 : f32 to vector<2x4x128xf32>
    %43 = arith.select %41, %37, %42 : vector<2x4x128xi1>, vector<2x4x128xf32>
    %cst_16 = arith.constant dense<0.000000e+00> : vector<2x128xf32>
    %44 = vector.multi_reduction <add>, %43, %cst_16 [1] : vector<2x4x128xf32> to vector<2x128xf32>
    %cst_17 = arith.constant 0.000000e+00 : f32
    %45 = vector.broadcast %cst_17 : f32 to vector<2x128xf32>
    %46 = arith.select %6, %44, %45 : vector<2x128xi1>, vector<2x128xf32>
    %47 = math.exp %46 : vector<2x128xf32>
    %cst_18 = arith.constant 1.000000e+00 : f32
    %48 = vector.broadcast %cst_18 : f32 to vector<2x128xf32>
    %49 = arith.subf %48, %47 : vector<2x128xf32>
    %50 = arith.mulf %49, %49 : vector<2x128xf32>
    %51 = arith.mulf %50, %46 : vector<2x128xf32>
    %52 = vector.shape_cast %51 : vector<2x128xf32> to vector<1x2x128xf32>
    %cst_19 = arith.constant dense<0.000000e+00> : vector<1xf32>
    %53 = vector.multi_reduction <add>, %52, %cst_19 [1, 2] : vector<1x2x128xf32> to vector<1xf32>
    %54 = vector.shape_cast %53 : vector<1xf32> to vector<1x1x1xf32>
    %55 = vector.extract %54[0, 0, 0] : f32 from vector<1x1x1xf32>
    %cst_20 = arith.constant 0.000000e+00 : f32
    %56 = arith.subf %cst_20, %55 : f32
    %57 = tpu.iota {dimensions = array<i32: 2>} : vector<1x1x128xi32>
    %c0_i32_21 = arith.constant 0 : i32
    %58 = vector.broadcast %c0_i32_21 : i32 to vector<1x1x128xi32>
    %59 = arith.cmpi eq, %57, %58 : vector<1x1x128xi32>
    %c1_i32 = arith.constant 1 : i32
    %60 = vector.broadcast %c1_i32 : i32 to vector<1x1x128xi32>
    %61 = arith.cmpi eq, %57, %60 : vector<1x1x128xi32>
    %c2_i32 = arith.constant 2 : i32
    %62 = vector.broadcast %c2_i32 : i32 to vector<1x1x128xi32>
    %63 = arith.cmpi eq, %57, %62 : vector<1x1x128xi32>
    %cst_22 = arith.constant 0.000000e+00 : f32
    %64 = vector.broadcast %56 : f32 to vector<1x1x128xf32>
    %65 = vector.broadcast %cst_22 : f32 to vector<1x1x128xf32>
    %66 = arith.select %63, %64, %65 : vector<1x1x128xi1>, vector<1x1x128xf32>
    %67 = vector.broadcast %36 : f32 to vector<1x1x128xf32>
    %68 = arith.select %61, %67, %66 : vector<1x1x128xi1>, vector<1x1x128xf32>
    %69 = vector.broadcast %15 : f32 to vector<1x1x128xf32>
    %70 = arith.select %59, %69, %68 : vector<1x1x128xi1>, vector<1x1x128xf32>
    %c0_23 = arith.constant 0 : index
    %c0_24 = arith.constant 0 : index
    %c0_25 = arith.constant 0 : index
    %71 = vector.load %arg5[%c0_23, %c0_24, %c0_25] : memref<1x1x128xf32, #tpu.memory_space<vmem>>, vector<1x1x128xf32>
    tpu.vector_store %arg5[%c0_23, %c0_24, %c0_25], %70 {strides = array<i32>} : memref<1x1x128xf32, #tpu.memory_space<vmem>>, vector<1x1x128xf32>,
    return
  }
  func.func @transform_0(%arg0: i32) -> (i32, i32, i32) {
    %c0_i32 = arith.constant 0 : i32
    %c0_i32_0 = arith.constant 0 : i32
    %c0_i32_1 = arith.constant 0 : i32
    return %c0_i32, %c0_i32_0, %arg0 : i32, i32, i32
  }
  func.func @transform_1(%arg0: i32) -> (i32, i32, i32) {
    %c0_i32 = arith.constant 0 : i32
    %c0_i32_0 = arith.constant 0 : i32
    %c0_i32_1 = arith.constant 0 : i32
    return %c0_i32, %c0_i32_0, %arg0 : i32, i32, i32
  }
  func.func @transform_2(%arg0: i32) -> (i32, i32, i32) {
    %c0_i32 = arith.constant 0 : i32
    %c0_i32_0 = arith.constant 0 : i32
    %c0_i32_1 = arith.constant 0 : i32
    return %c0_i32, %c0_i32_0, %arg0 : i32, i32, i32
  }
  func.func @transform_3(%arg0: i32) -> (i32, i32) {
    %c0_i32 = arith.constant 0 : i32
    %c0_i32_0 = arith.constant 0 : i32
    return %c0_i32, %arg0 : i32, i32
  }
  func.func @transform_4(%arg0: i32) -> (i32, i32, i32) {
    %c0_i32 = arith.constant 0 : i32
    %c0_i32_0 = arith.constant 0 : i32
    %c0_i32_1 = arith.constant 0 : i32
    return %arg0, %c0_i32, %c0_i32_0 : i32, i32, i32
  }
}

</mosaic_0001>

<llo_original>
// kernel: tpu_custom_call.1
$region0: #{tpu_custom_call.1}
  #allocation0 [shape = 'u32[]', space=smem, size = 0x4, offset = 0x4, fixed_abs, tag = 'smem constant byte address 0x4 - core index']
  #allocation1 [shape = 'u32[144,128]{1,0:T(1,128)}', space=vmem, size = 0x12000, scoped, tag = 'internal scratch']
  %s0 = inlined_call_operand.hbm [shape: f32[2,4,16], index: 0, kind: input, shape index: {}]
  %s1 = inlined_call_operand.hbm [shape: f32[2,4,16], index: 1, kind: input, shape index: {}]
  %s2 = inlined_call_operand.hbm [shape: f32[2,4,16], index: 2, kind: input, shape index: {}]
  %s3 = inlined_call_operand.vmem [shape: s32[2,16], index: 3, kind: input, shape index: {}]
  %s4 = inlined_call_operand.hbm [shape: f32[1,1,128], index: 4, kind: output, shape index: {}]
  %s5 = sld [smem:[#allocation0]]
  $region38: #{tpu_custom_call.1} parent=0
    _
  %s7 = ssub.s32 1, %s5
  %s8 = scalar_select 0, %s7, %s5
  $region1: #{tpu_custom_call.1} parent=0
    #allocation2 [shape = 'u8[4096]{0}', space=vmem, size = 0x1000, scoped, tag = 'input window, operand 0, single buffered']
    #allocation3 [shape = 's32[1]{0}', space=sflag, size = 0x4, scoped, tag = 'scoped memory for tpu_custom_call.1']
    #allocation4 [shape = 's32[1]{0}', space=sflag, size = 0x4, scoped, tag = 'scoped memory for tpu_custom_call.1']
    #allocation5 [shape = 'u8[4096]{0}', space=vmem, size = 0x1000, scoped, tag = 'input window, operand 1, single buffered']
    #allocation6 [shape = 's32[1]{0}', space=sflag, size = 0x4, scoped, tag = 'scoped memory for tpu_custom_call.1']
    #allocation7 [shape = 'u8[4096]{0}', space=vmem, size = 0x1000, scoped, tag = 'input window, operand 2, single buffered']
    #allocation8 [shape = 'u8[512]{0}', space=vmem, size = 0x400, scoped, tag = 'output window, operand 0, single buffered']
    %9 = vsyncpa [#allocation3], 0
    %10 = vsyncpa [#allocation6], 0
    %11 = vsyncpa [#allocation4], 0
    // Predicated region
    $region2: #{tpu_custom_call.1} parent=1 // pred_check
      _
    $region3: #{tpu_custom_call.1} parent=1 // pred_check_branch
      %13 = sbr.rel (0) target = $region5
    $region4: #{tpu_custom_call.1} parent=1 // pred_region
      %s15 = ssub.s32 128, 128
      %16 = vsyncadd [#allocation3], %s15
      %s17 = sshll.u32 [#allocation2], 4
      %s18 = int_to_ptr.vmem [resolvable:$true] %s17
      %23 = dma.hbm_to_vmem [thread:$0]  %s0, 128, %s18, [#allocation3], 64, 64, 4
    $region5: #{tpu_custom_call.1} parent=1 // pred_fallthru
      _
    // Predicated region
    $region6: #{tpu_custom_call.1} parent=1 // pred_check
      _
    $region7: #{tpu_custom_call.1} parent=1 // pred_check_branch
      %25 = sbr.rel (0) target = $region9
    $region8: #{tpu_custom_call.1} parent=1 // pred_region
      %s27 = ssub.s32 128, 128
      %28 = vsyncadd [#allocation6], %s27
      %s29 = sshll.u32 [#allocation5], 4
      %s30 = int_to_ptr.vmem [resolvable:$true] %s29
      %35 = dma.hbm_to_vmem [thread:$0]  %s1, 128, %s30, [#allocation6], 64, 64, 4
    $region9: #{tpu_custom_call.1} parent=1 // pred_fallthru
      _
    // Predicated region
    $region10: #{tpu_custom_call.1} parent=1 // pred_check
      _
    $region11: #{tpu_custom_call.1} parent=1 // pred_check_branch
      %37 = sbr.rel (0) target = $region13
    $region12: #{tpu_custom_call.1} parent=1 // pred_region
      %s39 = ssub.s32 128, 128
      %40 = vsyncadd [#allocation6], %s39
      %s41 = sshll.u32 [#allocation7], 4
      %s42 = int_to_ptr.vmem [resolvable:$true] %s41
      %47 = dma.hbm_to_vmem [thread:$0]  %s2, 128, %s42, [#allocation6], 64, 64, 4
    $region13: #{tpu_custom_call.1} parent=1 // pred_fallthru
      _
    // Predicated region
    $region14: #{tpu_custom_call.1} parent=1 // pred_check
      _
    $region15: #{tpu_custom_call.1} parent=1 // pred_check_branch
      %49 = sbr.rel (0) target = $region17
    $region16: #{tpu_custom_call.1} parent=1 // pred_region
      _
    $region17: #{tpu_custom_call.1} parent=1 // pred_fallthru
      _
    // Predicated region
    $region18: #{tpu_custom_call.1} parent=1 // pred_check
      _
    $region19: #{tpu_custom_call.1} parent=1 // pred_check_branch
      %51 = sbr.rel (0) target = $region21
    $region20: #{tpu_custom_call.1} parent=1 // pred_region
      %52 = dma.done [#allocation3], 128
    $region21: #{tpu_custom_call.1} parent=1 // pred_fallthru
      _
    // Predicated region
    $region22: #{tpu_custom_call.1} parent=1 // pred_check
      _
    $region23: #{tpu_custom_call.1} parent=1 // pred_check_branch
      %54 = sbr.rel (0) target = $region25
    $region24: #{tpu_custom_call.1} parent=1 // pred_region
      %55 = dma.done [#allocation6], 128
    $region25: #{tpu_custom_call.1} parent=1 // pred_fallthru
      _
    // Predicated region
    $region26: #{tpu_custom_call.1} parent=1 // pred_check
      _
    $region27: #{tpu_custom_call.1} parent=1 // pred_check_branch
      %57 = sbr.rel (0) target = $region29
    $region28: #{tpu_custom_call.1} parent=1 // pred_region
      %58 = dma.done [#allocation6], 128
    $region29: #{tpu_custom_call.1} parent=1 // pred_fallthru
      _
    %v59 = vld [vmem:[%s3] sm:$0x3]
    %s60 = smul.u32 0, 128
    %v61 = vlaneseq
    %v62 = vand.u32 %v61, 127
    %v63 = vstv %s60
    %v64 = vadd.s32 %v63, %v62
    %vm65 = vcmp.lt.s32.totalorder %v64, 16
    %vm66 = vcmp.gt.s32.totalorder %v59, 0
    %vm67 = vmand %vm65, %vm66
    %v68 = vsel %vm67, 1, 0
    %v69 = vcvt.s32.f32 %v68
    %vm70 = vcmask 1041408
    %v71 = vsel %vm70, %v69, 0.0
    %72 = vadd.xlane.f32.xlu0 %v71
    %v73 = vpop.xlane.xlu0 %72
    %v74 = vrot.slane %v73, 4
    %v75 = vadd.f32 %v73, %v74
    %v76 = vrot.slane %v75, 2
    %v77 = vadd.f32 %v75, %v76
    %v78 = vrot.slane %v77, 1
    %v79 = vadd.f32 %v77, %v78
    %s80 = vtos %v79
    %v81 = vld [vmem:[#allocation2] sm:$0xf]
    %v82 = vld [vmem:[#allocation2 + $0x4] sm:$0xf]
    %v83 = vld [vmem:[#allocation5] sm:$0xf]
    %v84 = vld [vmem:[#allocation5 + $0x4] sm:$0xf]
    %v85 = vsub.f32 %v81, %v83
    %v86 = vsub.f32 %v82, %v84
    %v87 = vand.u32 2147483647, %v85
    %v88 = vand.u32 2147483647, %v86
    %vm89 = vcmp.lt.f32.partialorder %v87, 1.0
    %vm90 = vcmp.lt.f32.partialorder %v88, 1.0
    %v91 = vmul.f32 %v87, 0.5
    %v92 = vmul.f32 %v88, 0.5
    %v93 = vmul.f32 %v91, %v87
    %v94 = vmul.f32 %v92, %v88
    %v95 = vsub.f32 %v87, 0.5
    %v96 = vsub.f32 %v88, 0.5
    %v97 = vsel %vm89, %v93, %v95
    %v98 = vsel %vm90, %v94, %v96
    %v100 = vunpack.c.l.s4 1966171168
    %v101 = vunpack.c.0.s8 %v100
    %v102 = vlaneseq
    %v103 = vshrl.u32 %v102, 7
    %v104 = vsub.s32 %v101, %v103
    %v105 = vrot.slane %v68, %v104
    %v106 = vcombine.high %v105, %v105
    %v108 = vunpack.c.l.s4 1966171168
    %v109 = vunpack.c.0.s8 %v108
    %v110 = vlaneseq
    %v111 = vshrl.u32 %v110, 7
    %v112 = vsub.s32 %v109, %v111
    %v113 = vrot.slane %v105, %v112
    %v115 = vunpack.c.l.s4 1966171168
    %v116 = vunpack.c.0.s8 %v115
    %v117 = vlaneseq
    %v118 = vshrl.u32 %v117, 7
    %v119 = vsub.s32 %v116, %v118
    %v120 = vrot.slane %v106, %v119
    %vm121 = vcmp.ne.s32.totalorder %v113, 0
    %vm122 = vcmp.ne.s32.totalorder %v120, 0
    %v123 = vsel %vm121, 1, 0
    %v124 = vsel %vm122, 1, 0
    %v125 = vlaneseq
    %v126 = vshrl.u32 %v125, 7
    %v127 = vsub.s32 0, %v126
    %v128 = vrot.slane %v123, %v127
    %v129 = vlaneseq
    %v130 = vshrl.u32 %v129, 7
    %v131 = vsub.s32 0, %v130
    %v132 = vrot.slane %v124, %v131
    %vm133 = vcmp.eq.s32.totalorder %v128, 1
    %vm134 = vcmp.eq.s32.totalorder %v132, 1
    %v135 = vsel %vm133, %v97, 0.0
    %v136 = vsel %vm134, %v98, 0.0
    %vm137 = vcmask 1043456
    %v138 = vsel %vm137, %v135, 0.0
    %v139 = vsel %vm137, %v136, 0.0
    %v140 = vadd.f32 %v138, %v139
    %141 = vadd.xlane.f32.xlu0 %v140
    %v142 = vpop.xlane.xlu0 %141
    %v143 = vrot.slane %v142, 4
    %v144 = vadd.f32 %v142, %v143
    %v145 = vrot.slane %v144, 2
    %v146 = vadd.f32 %v144, %v145
    %v147 = vrot.slane %v146, 1
    %v148 = vadd.f32 %v146, %v147
    %s149 = vtos %v148
    %v150 = vld [vmem:[#allocation7] sm:$0xf]
    %v151 = vld [vmem:[#allocation7 + $0x4] sm:$0xf]
    %v152 = vlaneseq
    %v153 = vshrl.u32 %v152, 7
    %v155 = vunpack.c.l.s4 1966171168
    %v156 = vunpack.c.0.s8 %v155
    %v157 = vlaneseq
    %v158 = vshrl.u32 %v157, 7
    %v159 = vsub.s32 %v156, %v158
    %v160 = vrot.slane %v59, %v159
    %v161 = vcombine.high %v160, %v160
    %v163 = vunpack.c.l.s4 1966171168
    %v164 = vunpack.c.0.s8 %v163
    %v165 = vlaneseq
    %v166 = vshrl.u32 %v165, 7
    %v167 = vsub.s32 %v164, %v166
    %v168 = vrot.slane %v160, %v167
    %v170 = vunpack.c.l.s4 1966171168
    %v171 = vunpack.c.0.s8 %v170
    %v172 = vlaneseq
    %v173 = vshrl.u32 %v172, 7
    %v174 = vsub.s32 %v171, %v173
    %v175 = vrot.slane %v161, %v174
    %v176 = vlaneseq
    %v177 = vshrl.u32 %v176, 7
    %v178 = vsub.s32 0, %v177
    %v179 = vrot.slane %v168, %v178
    %v180 = vlaneseq
    %v181 = vshrl.u32 %v180, 7
    %v182 = vsub.s32 0, %v181
    %v183 = vrot.slane %v175, %v182
    %vm184 = vcmp.eq.s32.totalorder %v153, %v179
    %vm185 = vcmp.eq.s32.totalorder %v153, %v183
    %v186 = vsel %vm184, %v150, 0.0
    %v187 = vsel %vm185, %v151, 0.0
    %v188 = vsel %vm137, %v186, 0.0
    %v189 = vrot.slane %v188, 4
    %v190 = vadd.f32 %v188, %v189
    %v191 = vrot.slane %v190, 2
    %v192 = vadd.f32 %v190, %v191
    %v193 = vrot.slane %v192, 1
    %v194 = vadd.f32 %v192, %v193
    %v195 = vsel %vm137, %v187, 0.0
    %v196 = vrot.slane %v195, 4
    %v197 = vadd.f32 %v195, %v196
    %v198 = vrot.slane %v197, 2
    %v199 = vadd.f32 %v197, %v198
    %v200 = vrot.slane %v199, 1
    %v201 = vadd.f32 %v199, %v200
    %vm204 = vcmask 1041409
    %v205 = vsel %vm204, %v201, %v194
    %v207 = vsel %vm65, %v205, 0.0
    %v208 = vmul.f32 %v207, 1.442695
    %v209 = vpow.pop %v208
    %v210 = vsub.f32 1.0, %v209
    %v211 = vmul.f32 %v210, %v210
    %v212 = vmul.f32 %v211, %v207
    %v213 = vsel %vm70, %v212, 0.0
    %214 = vadd.xlane.f32.xlu0 %v213
    %v215 = vpop.xlane.xlu0 %214
    %v216 = vrot.slane %v215, 4
    %v217 = vadd.f32 %v215, %v216
    %v218 = vrot.slane %v217, 2
    %v219 = vadd.f32 %v217, %v218
    %v220 = vrot.slane %v219, 1
    %v221 = vadd.f32 %v219, %v220
    %s222 = vtos %v221
    %s223 = ssub.f32 0.0, %s222
    %vm224 = vcmp.eq.s32.totalorder %v62, 0
    %vm225 = vcmp.eq.s32.totalorder %v62, 1
    %vm226 = vcmp.eq.s32.totalorder %v62, 2
    %v227 = vstv %s223
    %v228 = vsel %vm226, %v227, 0.0
    %v229 = vstv %s149
    %v230 = vsel %vm225, %v229, %v228
    %v231 = vstv %s80
    %v232 = vsel %vm224, %v231, %v230
    %233 = vst [vmem:[#allocation8] sm:$0x1] %v232
    // Predicated region
    $region30: #{tpu_custom_call.1} parent=1 // pred_check
      _
    $region31: #{tpu_custom_call.1} parent=1 // pred_check_branch
      %235 = sbr.rel (0) target = $region33
    $region32: #{tpu_custom_call.1} parent=1 // pred_region
      %s237 = ssub.s32 16, 16
      %238 = vsyncadd [#allocation4], %s237
      %s240 = sshll.u32 [#allocation8], 4
      %s241 = int_to_ptr.vmem [resolvable:$true] %s240
      %243 = dma.vmem_to_hbm [thread:$0]  %s241, 16, %s4, [#allocation4]
    $region33: #{tpu_custom_call.1} parent=1 // pred_fallthru
      _
    // Predicated region
    $region34: #{tpu_custom_call.1} parent=1 // pred_check
      _
    $region35: #{tpu_custom_call.1} parent=1 // pred_check_branch
      %245 = sbr.rel (0) target = $region37
    $region36: #{tpu_custom_call.1} parent=1 // pred_region
      %246 = dma.done [#allocation4], 16
    $region37: #{tpu_custom_call.1} parent=1 // pred_fallthru
      _
    %247 = vsyncpa [#allocation3], 1
    %248 = vsyncpa [#allocation6], 1
    %249 = vsyncpa [#allocation4], 1

</llo_original>
